<compile_context>
chip_gen: v5e
topology: v5e:2x2
jax: 0.10.0
libtpu: 0.0.40
codegen_flags: <defaults>
</compile_context>

<pallas_src>
import math

import jax
import jax.numpy as jnp
from jax.experimental import pallas as pl
from jax.experimental.pallas import tpu as pltpu

LANE = 128


def _rmsnorm_kernel(x_ref, scale_ref, o_ref, *, eps, inv_dim):
    # x_ref: (ROW_TILE, DIM_P) block; scale_ref: (1, DIM_P)
    x = x_ref[...]
    xf = x.astype(jnp.float32)                       # calcs in fp32
    # Sum over the (possibly zero-padded) lane axis and divide by the TRUE
    # dim so padded lanes don't perturb the mean.
    ms = jnp.sum(xf * xf, axis=-1, keepdims=True) * inv_dim
    normed = (xf * jax.lax.rsqrt(ms + eps)).astype(x.dtype)
    # match torch: cast back to input dtype, THEN multiply by scale
    o_ref[...] = (normed * scale_ref[...].astype(x.dtype)).astype(o_ref.dtype)


def _sublane_multiple(dtype) -> int:
    # 8 rows for 4-byte dtypes, 16 for 2-byte (bf16), 32 for 1-byte.
    return max(8, 32 // jnp.dtype(dtype).itemsize)


def _pick_row_tile(rows, dim_p, dtype, vmem_io_budget_bytes):
    """Largest row tile whose double-buffered I/O fits the VMEM budget."""
    mult = _sublane_multiple(dtype)
    itemsize = jnp.dtype(dtype).itemsize
    bytes_per_row = dim_p * itemsize
    # double-buffered input + double-buffered output ~= 4 live buffers/step
    rt = vmem_io_budget_bytes // (4 * bytes_per_row)
    rt = min(int(rt), 1024)                 # diminishing returns past ~1K rows
    rt = max((rt // mult) * mult, mult)     # dtype-aware sublane multiple
    rows_rounded = ((rows + mult - 1) // mult) * mult
    rt = min(rt, rows_rounded)              # don't exceed the problem size
    return max((rt // mult) * mult, mult)


def rmsnorm(x, scale, eps=1e-8, row_tile=None, vmem_io_budget_bytes=16 << 20):
    """x: (..., dim) array; scale: (dim,) parameter."""
    orig_shape = x.shape
    dim = orig_shape[-1]
    rows = math.prod(orig_shape[:-1]) if len(orig_shape) > 1 else 1
    x2d = x.reshape(rows, dim)

    # Lane-dense layout: pad the normalized dim to a multiple of 128 so every
    # vreg lane is used and stores are unmasked (biggest mem-bound layout win).
    dim_p = ((dim + LANE - 1) // LANE) * LANE
    if dim_p != dim:
        x2d = jnp.pad(x2d, ((0, 0), (0, dim_p - dim)))
        scale_p = jnp.pad(scale.reshape(-1), (0, dim_p - dim))
    else:
        scale_p = scale.reshape(-1)
    scale2d = scale_p.reshape(1, dim_p)

    if row_tile is None:
        row_tile = _pick_row_tile(rows, dim_p, x.dtype, vmem_io_budget_bytes)

    # Remainder handling: pad rows up to a tile multiple (zeros normalize to
    # zeros since eps > 0), slice afterwards.  No hard assert.
    rows_p = ((rows + row_tile - 1) // row_tile) * row_tile
    if rows_p != rows:
        x2d = jnp.pad(x2d, ((0, rows_p - rows), (0, 0)))

    grid = (rows_p // row_tile,)
    itemsize = jnp.dtype(x.dtype).itemsize
    cost = pl.CostEstimate(
        flops=3 * rows * dim,
        transcendentals=rows,
        bytes_accessed=2 * rows * dim * itemsize + dim * itemsize,
    )

    out = pl.pallas_call(
        lambda x_ref, s_ref, o_ref: _rmsnorm_kernel(
            x_ref, s_ref, o_ref, eps=eps, inv_dim=1.0 / dim),
        out_shape=jax.ShapeDtypeStruct((rows_p, dim_p), x.dtype),
        grid_spec=pltpu.PrefetchScalarGridSpec(
            num_scalar_prefetch=0,
            grid=grid,
            in_specs=[
                pl.BlockSpec((row_tile, dim_p), lambda i: (i, 0)),
                pl.BlockSpec((1, dim_p), lambda i: (0, 0)),  # scale, reused
            ],
            out_specs=pl.BlockSpec((row_tile, dim_p), lambda i: (i, 0)),
        ),
        compiler_params=pltpu.CompilerParams(
            dimension_semantics=("parallel",),
            # Above every generation's scoped default, under v7x's 64 MiB
            # physical VMEM; the I/O budget above stays well within it.
            vmem_limit_bytes=48 << 20,
        ),
        cost_estimate=cost,
    )(x2d, scale2d)

    out = out[:rows, :dim]
    return out.reshape(orig_shape)


def rmsnorm_ref(x, scale, eps=1e-8):
    xf = x.astype(jnp.float32)
    normed = xf * jax.lax.rsqrt(jnp.mean(xf * xf, axis=-1, keepdims=True) + eps)
    return normed.astype(x.dtype) * scale.astype(x.dtype)


if __name__ == "__main__":
    batch, seq, dim = 2, 8, 32
    key = jax.random.PRNGKey(0)
    x = jax.random.normal(key, (batch, seq, dim), dtype=jnp.float32)
    # nn.Parameter(torch.ones(dim)) -> deterministic ones init
    scale = jnp.ones((dim,), dtype=jnp.float32)

    out = rmsnorm(x, scale, eps=1e-8)
    jax.block_until_ready(out)

    ref = rmsnorm_ref(x, scale, eps=1e-8)
    assert out.shape == x.shape and out.dtype == x.dtype
    assert jnp.allclose(out, ref, atol=1e-5, rtol=1e-5)

    # Extra sanity check: non-tile-aligned row count + bf16 path.
    xb = jax.random.normal(jax.random.PRNGKey(1), (3, 7, dim)).astype(jnp.bfloat16)
    outb = rmsnorm(xb, scale.astype(jnp.bfloat16), eps=1e-8)
    jax.block_until_ready(outb)
    refb = rmsnorm_ref(xb, scale.astype(jnp.bfloat16), eps=1e-8)
    assert outb.shape == xb.shape and outb.dtype == xb.dtype
    assert jnp.allclose(outb.astype(jnp.float32), refb.astype(jnp.float32),
                        atol=2e-2, rtol=2e-2)

    print("KERNEL_OK")
</pallas_src>

<mosaic_0001>
module attributes {stable_mosaic.version = 11 : i64} {
  func.func @_lambda_(%arg0: i32, %arg1: memref<16x128xf32, #tpu.memory_space<vmem>>, %arg2: memref<1x128xf32, #tpu.memory_space<vmem>>, %arg3: memref<16x128xf32, #tpu.memory_space<vmem>>) attributes {dimension_semantics = [#tpu.dimension_semantics<parallel>], iteration_bounds = array<i64: 1>, scalar_prefetch = 0 : i64, scratch_operands = 0 : i64, tpu.core_type = #tpu.core_type<tc>, window_params = [{transform_indices = @transform_0, window_bounds = array<i64: 16, 128>}, {pipeline_mode = #tpu.pipeline_mode<synchronous>, transform_indices = @transform_1, window_bounds = array<i64: 1, 128>}, {transform_indices = @transform_2, window_bounds = array<i64: 16, 128>}]} {
    %c0 = arith.constant 0 : index
    %c0_0 = arith.constant 0 : index
    %0 = vector.load %arg1[%c0, %c0_0] : memref<16x128xf32, #tpu.memory_space<vmem>>, vector<16x128xf32>
    %1 = arith.mulf %0, %0 : vector<16x128xf32>
    %cst = arith.constant dense<0.000000e+00> : vector<16xf32>
    %2 = vector.multi_reduction <add>, %1, %cst [1] : vector<16x128xf32> to vector<16xf32>
    %3 = vector.shape_cast %2 : vector<16xf32> to vector<16x1xf32>
    %cst_1 = arith.constant 3.125000e-02 : f32
    %4 = vector.broadcast %cst_1 : f32 to vector<16x1xf32>
    %5 = arith.mulf %3, %4 : vector<16x1xf32>
    %cst_2 = arith.constant 9.99999993E-9 : f32
    %6 = vector.broadcast %cst_2 : f32 to vector<16x1xf32>
    %7 = arith.addf %5, %6 : vector<16x1xf32>
    %8 = math.rsqrt %7 : vector<16x1xf32>
    %9 = vector.broadcast %8 : vector<16x1xf32> to vector<16x128xf32>
    %10 = arith.mulf %0, %9 : vector<16x128xf32>
    %c0_3 = arith.constant 0 : index
    %c0_4 = arith.constant 0 : index
    %11 = vector.load %arg2[%c0_3, %c0_4] : memref<1x128xf32, #tpu.memory_space<vmem>>, vector<1x128xf32>
    %12 = vector.broadcast %11 : vector<1x128xf32> to vector<16x128xf32>
    %13 = arith.mulf %10, %12 : vector<16x128xf32>
    %c0_5 = arith.constant 0 : index
    %c0_6 = arith.constant 0 : index
    %14 = vector.load %arg3[%c0_5, %c0_6] : memref<16x128xf32, #tpu.memory_space<vmem>>, vector<16x128xf32>
    tpu.vector_store %arg3[%c0_5, %c0_6], %13 {strides = array<i32>} : memref<16x128xf32, #tpu.memory_space<vmem>>, vector<16x128xf32>,
    return
  }
  func.func @transform_0(%arg0: i32) -> (i32, i32) {
    %c0_i32 = arith.constant 0 : i32
    %c0_i32_0 = arith.constant 0 : i32
    return %arg0, %c0_i32 : i32, i32
  }
  func.func @transform_1(%arg0: i32) -> (i32, i32) {
    %c0_i32 = arith.constant 0 : i32
    %c0_i32_0 = arith.constant 0 : i32
    %c0_i32_1 = arith.constant 0 : i32
    return %c0_i32, %c0_i32_0 : i32, i32
  }
  func.func @transform_2(%arg0: i32) -> (i32, i32) {
    %c0_i32 = arith.constant 0 : i32
    %c0_i32_0 = arith.constant 0 : i32
    return %arg0, %c0_i32 : i32, i32
  }
}

</mosaic_0001>

<llo_original>
// kernel: tpu_custom_call.1
$region0: #{tpu_custom_call.1}
  #allocation0 [shape = 'u32[]', space=smem, size = 0x4, offset = 0x4, fixed_abs, tag = 'smem constant byte address 0x4 - core index']
  #allocation1 [shape = 'u32[72,128]{1,0:T(1,128)}', space=vmem, size = 0x9000, scoped, tag = 'internal scratch']
  %s0 = inlined_call_operand.hbm [shape: f32[16,128], index: 0, kind: input, shape index: {}]
  %s1 = inlined_call_operand.hbm [shape: f32[1,128], index: 1, kind: input, shape index: {}]
  %s2 = inlined_call_operand.hbm [shape: f32[16,128], index: 2, kind: output, shape index: {}]
  %s3 = sld [smem:[#allocation0]]
  $region26: #{tpu_custom_call.1} parent=0
    _
  %s5 = ssub.s32 1, %s3
  %s6 = scalar_select 0, %s5, %s3
  $region1: #{tpu_custom_call.1} parent=0
    #allocation2 [shape = 'u8[8192]{0}', space=vmem, size = 0x2000, scoped, tag = 'input window, operand 0, single buffered']
    #allocation3 [shape = 's32[1]{0}', space=sflag, size = 0x4, scoped, tag = 'scoped memory for tpu_custom_call.1']
    #allocation4 [shape = 's32[1]{0}', space=sflag, size = 0x4, scoped, tag = 'scoped memory for tpu_custom_call.1']
    #allocation5 [shape = 'u8[512]{0}', space=vmem, size = 0x400, scoped, tag = 'input window, operand 1, single buffered']
    #allocation6 [shape = 's32[1]{0}', space=sflag, size = 0x4, scoped, tag = 'scoped memory for tpu_custom_call.1']
    #allocation7 [shape = 'u8[8192]{0}', space=vmem, size = 0x2000, scoped, tag = 'output window, operand 0, single buffered']
    %7 = vsyncpa [#allocation3], 0
    %8 = vsyncpa [#allocation6], 0
    %9 = vsyncpa [#allocation4], 0
    // Predicated region
    $region2: #{tpu_custom_call.1} parent=1 // pred_check
      _
    $region3: #{tpu_custom_call.1} parent=1 // pred_check_branch
      %11 = sbr.rel (0) target = $region5
    $region4: #{tpu_custom_call.1} parent=1 // pred_region
      %13 = vsyncadd [#allocation3], 0
      %s14 = sshll.u32 %s0, 4
      %s15 = int_to_ptr.hbm [resolvable:$true] %s14
      %s16 = sshll.u32 [#allocation2], 4
      %s17 = int_to_ptr.vmem [resolvable:$true] %s16
      %22 = dma.hbm_to_vmem [thread:$0]  %s15, 256, %s17, [#allocation3], 128, 128, 8
    $region5: #{tpu_custom_call.1} parent=1 // pred_fallthru
      _
    // Predicated region
    $region6: #{tpu_custom_call.1} parent=1 // pred_check
      _
    $region7: #{tpu_custom_call.1} parent=1 // pred_check_branch
      %24 = sbr.rel (0) target = $region9
    $region8: #{tpu_custom_call.1} parent=1 // pred_region
      %26 = vsyncadd [#allocation6], 0
      %s28 = sshll.u32 %s1, 4
      %s29 = int_to_ptr.hbm [resolvable:$true] %s28
      %s30 = sshll.u32 [#allocation5], 4
      %s31 = int_to_ptr.vmem [resolvable:$true] %s30
      %33 = dma.hbm_to_vmem [thread:$0]  %s29, 16, %s31, [#allocation6]
    $region9: #{tpu_custom_call.1} parent=1 // pred_fallthru
      _
    // Predicated region
    $region10: #{tpu_custom_call.1} parent=1 // pred_check
      _
    $region11: #{tpu_custom_call.1} parent=1 // pred_check_branch
      %35 = sbr.rel (0) target = $region13
    $region12: #{tpu_custom_call.1} parent=1 // pred_region
      %37 = dma.done [#allocation3], 256
    $region13: #{tpu_custom_call.1} parent=1 // pred_fallthru
      _
    // Predicated region
    $region14: #{tpu_custom_call.1} parent=1 // pred_check
      _
    $region15: #{tpu_custom_call.1} parent=1 // pred_check_branch
      %39 = sbr.rel (0) target = $region17
    $region16: #{tpu_custom_call.1} parent=1 // pred_region
      %41 = dma.done [#allocation6], 16
    $region17: #{tpu_custom_call.1} parent=1 // pred_fallthru
      _
    %v42 = vld [vmem:[#allocation2] sm:$0xff]
    %v43 = vld [vmem:[#allocation2 + $0x8] sm:$0xff]
    %v44 = vmul.f32 %v42, %v42
    %v45 = vmul.f32 %v43, %v43
    %46 = vadd.xlane.f32.xlu0 %v44
    %v47 = vpop.xlane.xlu0 %46
    %48 = vadd.xlane.f32.xlu0 %v45
    %v49 = vpop.xlane.xlu0 %48
    %v50 = vmul.f32 %v47, 0.03125
    %v51 = vmul.f32 %v49, 0.03125
    %v52 = vadd.f32 %v50, 1e-08
    %v53 = vadd.f32 %v51, 1e-08
    %v54 = vrsqrt.pop %v52
    %v55 = vmul.f32 %v54, %v52
    %v56 = vmul.f32 %v55, %v54
    %v57 = vmul.f32 0.5, %v56
    %v58 = vsub.f32 1.5, %v57
    %v59 = vmul.f32 %v54, %v58
    %vm60 = vweird.f32 %v52
    %vm61 = vweird.f32 %v54
    %vm62 = vmor %vm60, %vm61
    %v63 = vsel %vm62, %v54, %v59
    %v64 = vrsqrt.pop %v53
    %v65 = vmul.f32 %v64, %v53
    %v66 = vmul.f32 %v65, %v64
    %v67 = vmul.f32 0.5, %v66
    %v68 = vsub.f32 1.5, %v67
    %v69 = vmul.f32 %v64, %v68
    %vm70 = vweird.f32 %v53
    %vm71 = vweird.f32 %v64
    %vm72 = vmor %vm70, %vm71
    %v73 = vsel %vm72, %v64, %v69
    %v74 = vmul.f32 %v42, %v63
    %v75 = vmul.f32 %v43, %v73
    %v76 = vld [vmem:[#allocation5] sm:$0x1]
    %v78 = vperm.slane %v76, 0
    %v80 = vmul.f32 %v74, %v78
    %v81 = vmul.f32 %v75, %v78
    %82 = vst [vmem:[#allocation7] sm:$0xff] %v80
    %83 = vst [vmem:[#allocation7 + $0x8] sm:$0xff] %v81
    // Predicated region
    $region18: #{tpu_custom_call.1} parent=1 // pred_check
      _
    $region19: #{tpu_custom_call.1} parent=1 // pred_check_branch
      %85 = sbr.rel (0) target = $region21
    $region20: #{tpu_custom_call.1} parent=1 // pred_region
      %87 = vsyncadd [#allocation4], 0
      %s88 = sshll.u32 [#allocation7], 4
      %s89 = int_to_ptr.vmem [resolvable:$true] %s88
      %s90 = sshll.u32 %s2, 4
      %s91 = int_to_ptr.hbm [resolvable:$true] %s90
      %96 = dma.vmem_to_hbm [thread:$0]  %s89, 256, %s91, [#allocation4], 128, 128, 8
    $region21: #{tpu_custom_call.1} parent=1 // pred_fallthru
      _
    // Predicated region
    $region22: #{tpu_custom_call.1} parent=1 // pred_check
      _
    $region23: #{tpu_custom_call.1} parent=1 // pred_check_branch
      %98 = sbr.rel (0) target = $region25
    $region24: #{tpu_custom_call.1} parent=1 // pred_region
      %100 = dma.done [#allocation4], 256
    $region25: #{tpu_custom_call.1} parent=1 // pred_fallthru
      _
    %101 = vsyncpa [#allocation3], 1
    %102 = vsyncpa [#allocation6], 1
    %103 = vsyncpa [#allocation4], 1

</llo_original>
